<compile_context>
chip_gen: v6e
topology: v6e:2x2x1
jax: 0.10.0
libtpu: 0.0.40
codegen_flags: <defaults>
</compile_context>

<pallas_src>
import functools

import jax
import jax.numpy as jnp
from jax import lax
from jax.experimental import pallas as pl
from jax.experimental.pallas import tpu as pltpu

# ---------------- model hyper-parameters (synthetic, deterministic) ----------
CIN = 3           # image channels
C1 = 32           # conv output channels
K = 3             # conv kernel size
CONV_STRIDE = 2   # conv spatial stride
PAD = 1
NA = 3            # anchors per location
NC = 3            # classes
NO = NC + 5       # outputs per anchor (x, y, w, h, obj, cls...)
N2 = NA * NO      # detect-head width = 24
DETECT_STRIDE = float(CONV_STRIDE)
ANCHORS = ((10.0, 13.0), (16.0, 30.0), (33.0, 23.0))


def _round_up(x, m):
    return ((x + m - 1) // m) * m


# ---------------------------- fused Pallas kernel -----------------------------
def fused_detect_kernel(TM, stride, Ho, Wo,
                        p_ref, w1_ref, b1_ref, w2_ref, b2_ref,
                        anc_ref, xm_ref, ym_ref, whm_ref, o_ref):
    """Conv(3x3,s2)+SiLU -> 1x1 detect conv -> sigmoid -> YOLO decode.

    p:(TM,K1) bf16, w1:(K1,C1) bf16, b1:(1,C1) f32,
    w2:(C1,N2) bf16, b2:(1,N2) f32, anc/xm/ym/whm:(1,N2) f32, o:(TM,N2) f32.
    """
    # ---- stage 1: im2col-matmul + bias + SiLU (features stay in VMEM/vregs) --
    a = jnp.dot(p_ref[...], w1_ref[...],
                preferred_element_type=jnp.float32) + b1_ref[...]
    f = a * jax.nn.sigmoid(a)                                    # SiLU, f32

    # ---- stage 2: detect head (1x1 conv) + bias + sigmoid --------------------
    z = jnp.dot(f.astype(jnp.bfloat16), w2_ref[...],
                preferred_element_type=jnp.float32) + b2_ref[...]
    s = jax.nn.sigmoid(z)                                        # (TM, N2) f32

    # ---- in-kernel decode constants (no HBM aux tensors) ---------------------
    # global row index -> flattened (b, ho, wo); float math only (VPU-safe).
    r = (pl.program_id(0) * TM
         + lax.broadcasted_iota(jnp.int32, (TM, 1), 0)).astype(jnp.float32)
    q = jnp.floor(r / Wo)                     # = b*Ho + ho
    wo = r - q * Wo                           # grid x
    ho = q - jnp.floor(q / Ho) * Ho           # grid y
    goff = ((wo - 0.5) * stride) * xm_ref[...] + ((ho - 0.5) * stride) * ym_ref[...]

    # xy = (sig*2 - 0.5 + grid) * stride == sig*(2*stride) + (grid-0.5)*stride
    xy = s * (2.0 * stride) + goff
    # wh = (sig*2)**2 * anchor
    wh = (s * 2.0) ** 2 * anc_ref[...]

    xym = xm_ref[...] + ym_ref[...]
    cls_m = 1.0 - xym - whm_ref[...]
    # arithmetic select (masks are exact 0/1): xy at cols 0:2, wh at 2:4, else sig
    o_ref[...] = xym * xy + whm_ref[...] * wh + cls_m * s


# ------------------------------- glue -----------------------------------------
def _im2col(x_nhwc, k, stride, pad):
    # TODO(synk): real-resolution version should do the im2col in-kernel
    # (halo'd NHWC tiles) instead of materializing the 2.25x patch matrix.
    B, H, W, C = x_nhwc.shape
    xp = jnp.pad(x_nhwc, ((0, 0), (pad, pad), (pad, pad), (0, 0)))
    Ho = (H + 2 * pad - k) // stride + 1
    Wo = (W + 2 * pad - k) // stride + 1
    cols = []
    for di in range(k):
        for dj in range(k):
            cols.append(xp[:, di:di + stride * (Ho - 1) + 1:stride,
                           dj:dj + stride * (Wo - 1) + 1:stride, :])
    patches = jnp.concatenate(cols, axis=-1)          # (B, Ho, Wo, k*k*C)
    return patches.reshape(B * Ho * Wo, k * k * C), Ho, Wo


def _decode_rows():
    """Tiny (1, N2) per-column constants: anchors and column-type masks."""
    anc = jnp.zeros((NA, NO), jnp.float32)
    anc = anc.at[:, 2:4].set(jnp.asarray(ANCHORS, jnp.float32))
    xm = jnp.zeros((NA, NO), jnp.float32).at[:, 0].set(1.0)
    ym = jnp.zeros((NA, NO), jnp.float32).at[:, 1].set(1.0)
    whm = jnp.zeros((NA, NO), jnp.float32).at[:, 2:4].set(1.0)
    return (anc.reshape(1, N2), xm.reshape(1, N2),
            ym.reshape(1, N2), whm.reshape(1, N2))


def init_params(key):
    k1, k2, k3, k4 = jax.random.split(key, 4)
    w_conv = jax.random.normal(k1, (C1, CIN, K, K), jnp.float32) * 0.1
    b_conv = jax.random.normal(k2, (C1,), jnp.float32) * 0.1
    w_head = jax.random.normal(k3, (NA * NO, C1, 1, 1), jnp.float32) * 0.1
    b_head = jax.random.normal(k4, (NA * NO,), jnp.float32) * 0.1
    return dict(w_conv=w_conv, b_conv=b_conv, w_head=w_head, b_head=b_head)


def detect_multibackend_forward(im_nchw, params):
    """Forward of DetectMultiBackend (val=False): returns y[0]."""
    B, C, H, W = im_nchw.shape
    # stream big operands as bf16 (halves HBM bytes, MXU-native); accum in f32
    x_nhwc = jnp.transpose(im_nchw, (0, 2, 3, 1)).astype(jnp.bfloat16)
    patches, Ho, Wo = _im2col(x_nhwc, K, CONV_STRIDE, PAD)       # (M1, K1) bf16
    M1, K1 = patches.shape

    # PyTorch weight (Cout,Cin,kh,kw) -> (kh,kw,Cin,Cout) -> (k*k*Cin, Cout)
    w1 = jnp.transpose(params["w_conv"], (2, 3, 1, 0)).reshape(K * K * CIN, C1)
    w1 = w1.astype(jnp.bfloat16)
    b1 = params["b_conv"].reshape(1, C1).astype(jnp.float32)
    w2 = params["w_head"].reshape(NA * NO, C1).T.astype(jnp.bfloat16)  # (C1,N2)
    b2 = params["b_head"].reshape(1, N2).astype(jnp.float32)
    anc, xm, ym, whm = _decode_rows()

    # Row tiling: large tiles (mem-bound kernel), pad rows so TM need not
    # divide M1.  Per-tile VMEM (double-buffered) stays well under the 32 MiB
    # limit even on v7x.
    TM = min(512, _round_up(M1, 8))
    Mp = _round_up(M1, TM)
    if Mp != M1:
        patches = jnp.pad(patches, ((0, Mp - M1), (0, 0)))

    kernel = functools.partial(fused_detect_kernel, TM, DETECT_STRIDE, Ho, Wo)
    dec = pl.pallas_call(
        kernel,
        out_shape=jax.ShapeDtypeStruct((Mp, N2), jnp.float32),
        grid=(Mp // TM,),
        in_specs=[
            pl.BlockSpec((TM, K1), lambda i: (i, 0)),   # patches (streamed)
            pl.BlockSpec((K1, C1), lambda i: (0, 0)),   # conv weight (resident)
            pl.BlockSpec((1, C1), lambda i: (0, 0)),    # conv bias
            pl.BlockSpec((C1, N2), lambda i: (0, 0)),   # head weight
            pl.BlockSpec((1, N2), lambda i: (0, 0)),    # head bias
            pl.BlockSpec((1, N2), lambda i: (0, 0)),    # anchors row
            pl.BlockSpec((1, N2), lambda i: (0, 0)),    # x-mask row
            pl.BlockSpec((1, N2), lambda i: (0, 0)),    # y-mask row
            pl.BlockSpec((1, N2), lambda i: (0, 0)),    # wh-mask row
        ],
        out_specs=pl.BlockSpec((TM, N2), lambda i: (i, 0)),
        compiler_params=pltpu.CompilerParams(
            dimension_semantics=("parallel",),
            vmem_limit_bytes=32 * 1024 * 1024),
    )(patches, w1, b1, w2, b2, anc, xm, ym, whm)

    dec = dec[:M1]
    # (B*Ho*Wo, NA*NO) -> (B, NA*Ho*Wo, NO), anchor-major (YOLOv5 y[0] order).
    # TODO(synk): fold this anchor-major transpose (and a lane-dense packed
    # output layout) into the kernel's out_spec to avoid the extra XLA copy.
    y0 = dec.reshape(B, Ho, Wo, NA, NO)
    y0 = jnp.transpose(y0, (0, 3, 1, 2, 4)).reshape(B, NA * Ho * Wo, NO)
    return y0


# ------------------------ pure-JAX reference (same dtype policy) ---------------
def _decode_aux(B, Ho, Wo):
    gy, gx = jnp.meshgrid(jnp.arange(Ho), jnp.arange(Wo), indexing="ij")
    grid_xy = jnp.stack([gx, gy], -1).astype(jnp.float32)        # (Ho,Wo,2)
    goff_xy = (grid_xy - 0.5) * DETECT_STRIDE
    goff = jnp.zeros((Ho, Wo, NA, NO), jnp.float32)
    goff = goff.at[..., 0:2].set(goff_xy[:, :, None, :])
    goff = jnp.broadcast_to(goff[None], (B, Ho, Wo, NA, NO)).reshape(B * Ho * Wo, N2)
    anc = jnp.zeros((NA, NO), jnp.float32).at[:, 2:4].set(jnp.asarray(ANCHORS, jnp.float32))
    anc = jnp.broadcast_to(anc.reshape(1, N2), (B * Ho * Wo, N2))
    xym = jnp.zeros((NA, NO), jnp.float32).at[:, 0:2].set(1.0)
    whm = jnp.zeros((NA, NO), jnp.float32).at[:, 2:4].set(1.0)
    xym = jnp.broadcast_to(xym.reshape(1, N2), (B * Ho * Wo, N2))
    whm = jnp.broadcast_to(whm.reshape(1, N2), (B * Ho * Wo, N2))
    return goff, anc, xym, whm


def _reference(im_nchw, params):
    B = im_nchw.shape[0]
    x = jnp.transpose(im_nchw, (0, 2, 3, 1)).astype(jnp.bfloat16)
    patches, Ho, Wo = _im2col(x, K, CONV_STRIDE, PAD)
    w1 = jnp.transpose(params["w_conv"], (2, 3, 1, 0)).reshape(K * K * CIN, C1)
    a = jnp.dot(patches, w1.astype(jnp.bfloat16),
                preferred_element_type=jnp.float32) + params["b_conv"]
    f = a * jax.nn.sigmoid(a)
    w2 = params["w_head"].reshape(NA * NO, C1).T.astype(jnp.bfloat16)
    z = jnp.dot(f.astype(jnp.bfloat16), w2,
                preferred_element_type=jnp.float32) + params["b_head"]
    s = jax.nn.sigmoid(z)
    goff, anc, xym, whm = _decode_aux(B, Ho, Wo)
    xy = s * (2.0 * DETECT_STRIDE) + goff
    wh = (s * 2.0) ** 2 * anc
    dec = jnp.where(xym > 0.5, xy, jnp.where(whm > 0.5, wh, s))
    y0 = dec.reshape(B, Ho, Wo, NA, NO)
    return jnp.transpose(y0, (0, 3, 1, 2, 4)).reshape(B, NA * Ho * Wo, NO)


if __name__ == "__main__":
    key = jax.random.PRNGKey(0)
    kp, kx = jax.random.split(key)
    params = init_params(kp)
    im = jax.random.uniform(kx, (2, CIN, 16, 16), jnp.float32)   # NCHW, like PyTorch

    fwd = jax.jit(detect_multibackend_forward)
    y = jax.block_until_ready(fwd(im, params))

    y_ref = jax.block_until_ready(_reference(im, params))
    assert y.shape == (2, NA * 8 * 8, NO), y.shape
    assert jnp.allclose(y, y_ref, rtol=1e-2, atol=1e-2), "mismatch vs reference"

    # TODO(synk): the real DetectMultiBackend loads an arbitrary YOLOv5
    # checkpoint (CSP backbone, PANet, multi-scale Detect); only a single
    # Conv+SiLU stage and one detection scale are reproduced here.
    print("KERNEL_OK")
</pallas_src>

<mosaic_0001>
module attributes {stable_mosaic.version = 11 : i64} {
  func.func @fused_detect_kernel(%arg0: i32, %arg1: memref<128x27xbf16, #tpu.memory_space<vmem>>, %arg2: memref<27x32xbf16, #tpu.memory_space<vmem>>, %arg3: memref<1x32xf32, #tpu.memory_space<vmem>>, %arg4: memref<32x24xbf16, #tpu.memory_space<vmem>>, %arg5: memref<1x24xf32, #tpu.memory_space<vmem>>, %arg6: memref<1x24xf32, #tpu.memory_space<vmem>>, %arg7: memref<1x24xf32, #tpu.memory_space<vmem>>, %arg8: memref<1x24xf32, #tpu.memory_space<vmem>>, %arg9: memref<1x24xf32, #tpu.memory_space<vmem>>, %arg10: memref<128x24xf32, #tpu.memory_space<vmem>>) attributes {dimension_semantics = [#tpu.dimension_semantics<parallel>], iteration_bounds = array<i64: 1>, scalar_prefetch = 0 : i64, scratch_operands = 0 : i64, tpu.core_type = #tpu.core_type<tc>, window_params = [{transform_indices = @transform_0, window_bounds = array<i64: 128, 27>}, {pipeline_mode = #tpu.pipeline_mode<synchronous>, transform_indices = @transform_1, window_bounds = array<i64: 27, 32>}, {pipeline_mode = #tpu.pipeline_mode<synchronous>, transform_indices = @transform_2, window_bounds = array<i64: 1, 32>}, {pipeline_mode = #tpu.pipeline_mode<synchronous>, transform_indices = @transform_3, window_bounds = array<i64: 32, 24>}, {pipeline_mode = #tpu.pipeline_mode<synchronous>, transform_indices = @transform_4, window_bounds = array<i64: 1, 24>}, {pipeline_mode = #tpu.pipeline_mode<synchronous>, transform_indices = @transform_5, window_bounds = array<i64: 1, 24>}, {pipeline_mode = #tpu.pipeline_mode<synchronous>, transform_indices = @transform_6, window_bounds = array<i64: 1, 24>}, {pipeline_mode = #tpu.pipeline_mode<synchronous>, transform_indices = @transform_7, window_bounds = array<i64: 1, 24>}, {pipeline_mode = #tpu.pipeline_mode<synchronous>, transform_indices = @transform_8, window_bounds = array<i64: 1, 24>}, {transform_indices = @transform_9, window_bounds = array<i64: 128, 24>}]} {
    %c0 = arith.constant 0 : index
    %c0_0 = arith.constant 0 : index
    %0 = vector.load %arg1[%c0, %c0_0] : memref<128x27xbf16, #tpu.memory_space<vmem>>, vector<128x27xbf16>
    %c0_1 = arith.constant 0 : index
    %c0_2 = arith.constant 0 : index
    %1 = vector.load %arg2[%c0_1, %c0_2] : memref<27x32xbf16, #tpu.memory_space<vmem>>, vector<27x32xbf16>
    %cst = arith.constant dense<0.000000e+00> : vector<128x32xf32>
    %2 = tpu.matmul %0, %1, %cst {dimension_numbers = #tpu.dot_dimension_numbers<[1], [0], [0], [1], [0, 0, 1, 1], [], []>} : vector<128x27xbf16>, vector<27x32xbf16>, vector<128x32xf32> -> vector<128x32xf32>
    %c0_3 = arith.constant 0 : index
    %c0_4 = arith.constant 0 : index
    %3 = vector.load %arg3[%c0_3, %c0_4] : memref<1x32xf32, #tpu.memory_space<vmem>>, vector<1x32xf32>
    %4 = vector.broadcast %3 : vector<1x32xf32> to vector<128x32xf32>
    %5 = arith.addf %2, %4 : vector<128x32xf32>
    %6 = arith.negf %5 : vector<128x32xf32>
    %7 = math.exp %6 : vector<128x32xf32>
    %cst_5 = arith.constant 1.000000e+00 : f32
    %8 = vector.broadcast %cst_5 : f32 to vector<128x32xf32>
    %9 = arith.addf %8, %7 : vector<128x32xf32>
    %10 = arith.divf %8, %9 : vector<128x32xf32>
    %11 = arith.mulf %5, %10 : vector<128x32xf32>
    %12 = arith.truncf %11 : vector<128x32xf32> to vector<128x32xbf16>
    %c0_6 = arith.constant 0 : index
    %c0_7 = arith.constant 0 : index
    %13 = vector.load %arg4[%c0_6, %c0_7] : memref<32x24xbf16, #tpu.memory_space<vmem>>, vector<32x24xbf16>
    %cst_8 = arith.constant dense<0.000000e+00> : vector<128x24xf32>
    %14 = tpu.matmul %12, %13, %cst_8 {dimension_numbers = #tpu.dot_dimension_numbers<[1], [0], [0], [1], [0, 0, 1, 1], [], []>} : vector<128x32xbf16>, vector<32x24xbf16>, vector<128x24xf32> -> vector<128x24xf32>
    %c0_9 = arith.constant 0 : index
    %c0_10 = arith.constant 0 : index
    %15 = vector.load %arg5[%c0_9, %c0_10] : memref<1x24xf32, #tpu.memory_space<vmem>>, vector<1x24xf32>
    %16 = vector.broadcast %15 : vector<1x24xf32> to vector<128x24xf32>
    %17 = arith.addf %14, %16 : vector<128x24xf32>
    %18 = arith.negf %17 : vector<128x24xf32>
    %19 = math.exp %18 : vector<128x24xf32>
    %cst_11 = arith.constant 1.000000e+00 : f32
    %20 = vector.broadcast %cst_11 : f32 to vector<128x24xf32>
    %21 = arith.addf %20, %19 : vector<128x24xf32>
    %22 = arith.divf %20, %21 : vector<128x24xf32>
    %c128_i32 = arith.constant 128 : i32
    %23 = arith.muli %arg0, %c128_i32 : i32
    %24 = tpu.iota {dimensions = array<i32: 0>} : vector<128x1xi32>
    %25 = vector.broadcast %23 : i32 to vector<128x1xi32>
    %26 = arith.addi %25, %24 : vector<128x1xi32>
    %27 = arith.sitofp %26 : vector<128x1xi32> to vector<128x1xf32>
    %cst_12 = arith.constant 8.000000e+00 : f32
    %28 = vector.broadcast %cst_12 : f32 to vector<128x1xf32>
    %29 = arith.divf %27, %28 : vector<128x1xf32>
    %30 = math.floor %29 : vector<128x1xf32>
    %cst_13 = arith.constant 8.000000e+00 : f32
    %31 = vector.broadcast %cst_13 : f32 to vector<128x1xf32>
    %32 = arith.mulf %30, %31 : vector<128x1xf32>
    %33 = arith.subf %27, %32 : vector<128x1xf32>
    %cst_14 = arith.constant 8.000000e+00 : f32
    %34 = vector.broadcast %cst_14 : f32 to vector<128x1xf32>
    %35 = arith.divf %30, %34 : vector<128x1xf32>
    %36 = math.floor %35 : vector<128x1xf32>
    %cst_15 = arith.constant 8.000000e+00 : f32
    %37 = vector.broadcast %cst_15 : f32 to vector<128x1xf32>
    %38 = arith.mulf %36, %37 : vector<128x1xf32>
    %39 = arith.subf %30, %38 : vector<128x1xf32>
    %cst_16 = arith.constant 5.000000e-01 : f32
    %40 = vector.broadcast %cst_16 : f32 to vector<128x1xf32>
    %41 = arith.subf %33, %40 : vector<128x1xf32>
    %cst_17 = arith.constant 2.000000e+00 : f32
    %42 = vector.broadcast %cst_17 : f32 to vector<128x1xf32>
    %43 = arith.mulf %41, %42 : vector<128x1xf32>
    %c0_18 = arith.constant 0 : index
    %c0_19 = arith.constant 0 : index
    %44 = vector.load %arg7[%c0_18, %c0_19] : memref<1x24xf32, #tpu.memory_space<vmem>>, vector<1x24xf32>
    %45 = vector.broadcast %43 : vector<128x1xf32> to vector<128x24xf32>
    %46 = vector.broadcast %44 : vector<1x24xf32> to vector<128x24xf32>
    %47 = arith.mulf %45, %46 : vector<128x24xf32>
    %cst_20 = arith.constant 5.000000e-01 : f32
    %48 = vector.broadcast %cst_20 : f32 to vector<128x1xf32>
    %49 = arith.subf %39, %48 : vector<128x1xf32>
    %cst_21 = arith.constant 2.000000e+00 : f32
    %50 = vector.broadcast %cst_21 : f32 to vector<128x1xf32>
    %51 = arith.mulf %49, %50 : vector<128x1xf32>
    %c0_22 = arith.constant 0 : index
    %c0_23 = arith.constant 0 : index
    %52 = vector.load %arg8[%c0_22, %c0_23] : memref<1x24xf32, #tpu.memory_space<vmem>>, vector<1x24xf32>
    %53 = vector.broadcast %51 : vector<128x1xf32> to vector<128x24xf32>
    %54 = vector.broadcast %52 : vector<1x24xf32> to vector<128x24xf32>
    %55 = arith.mulf %53, %54 : vector<128x24xf32>
    %56 = arith.addf %47, %55 : vector<128x24xf32>
    %cst_24 = arith.constant 4.000000e+00 : f32
    %57 = vector.broadcast %cst_24 : f32 to vector<128x24xf32>
    %58 = arith.mulf %22, %57 : vector<128x24xf32>
    %59 = arith.addf %58, %56 : vector<128x24xf32>
    %cst_25 = arith.constant 2.000000e+00 : f32
    %60 = vector.broadcast %cst_25 : f32 to vector<128x24xf32>
    %61 = arith.mulf %22, %60 : vector<128x24xf32>
    %62 = arith.mulf %61, %61 : vector<128x24xf32>
    %c0_26 = arith.constant 0 : index
    %c0_27 = arith.constant 0 : index
    %63 = vector.load %arg6[%c0_26, %c0_27] : memref<1x24xf32, #tpu.memory_space<vmem>>, vector<1x24xf32>
    %64 = vector.broadcast %63 : vector<1x24xf32> to vector<128x24xf32>
    %65 = arith.mulf %62, %64 : vector<128x24xf32>
    %c0_28 = arith.constant 0 : index
    %c0_29 = arith.constant 0 : index
    %66 = vector.load %arg7[%c0_28, %c0_29] : memref<1x24xf32, #tpu.memory_space<vmem>>, vector<1x24xf32>
    %c0_30 = arith.constant 0 : index
    %c0_31 = arith.constant 0 : index
    %67 = vector.load %arg8[%c0_30, %c0_31] : memref<1x24xf32, #tpu.memory_space<vmem>>, vector<1x24xf32>
    %68 = arith.addf %66, %67 : vector<1x24xf32>
    %cst_32 = arith.constant 1.000000e+00 : f32
    %69 = vector.broadcast %cst_32 : f32 to vector<1x24xf32>
    %70 = arith.subf %69, %68 : vector<1x24xf32>
    %c0_33 = arith.constant 0 : index
    %c0_34 = arith.constant 0 : index
    %71 = vector.load %arg9[%c0_33, %c0_34] : memref<1x24xf32, #tpu.memory_space<vmem>>, vector<1x24xf32>
    %72 = arith.subf %70, %71 : vector<1x24xf32>
    %73 = vector.broadcast %68 : vector<1x24xf32> to vector<128x24xf32>
    %74 = arith.mulf %73, %59 : vector<128x24xf32>
    %c0_35 = arith.constant 0 : index
    %c0_36 = arith.constant 0 : index
    %75 = vector.load %arg9[%c0_35, %c0_36] : memref<1x24xf32, #tpu.memory_space<vmem>>, vector<1x24xf32>
    %76 = vector.broadcast %75 : vector<1x24xf32> to vector<128x24xf32>
    %77 = arith.mulf %76, %65 : vector<128x24xf32>
    %78 = arith.addf %74, %77 : vector<128x24xf32>
    %79 = vector.broadcast %72 : vector<1x24xf32> to vector<128x24xf32>
    %80 = arith.mulf %79, %22 : vector<128x24xf32>
    %81 = arith.addf %78, %80 : vector<128x24xf32>
    %c0_37 = arith.constant 0 : index
    %c0_38 = arith.constant 0 : index
    %82 = vector.load %arg10[%c0_37, %c0_38] : memref<128x24xf32, #tpu.memory_space<vmem>>, vector<128x24xf32>
    tpu.vector_store %arg10[%c0_37, %c0_38], %81 {strides = array<i32>} : memref<128x24xf32, #tpu.memory_space<vmem>>, vector<128x24xf32>,
    return
  }
  func.func @transform_0(%arg0: i32) -> (i32, i32) {
    %c0_i32 = arith.constant 0 : i32
    %c0_i32_0 = arith.constant 0 : i32
    return %arg0, %c0_i32 : i32, i32
  }
  func.func @transform_1(%arg0: i32) -> (i32, i32) {
    %c0_i32 = arith.constant 0 : i32
    %c0_i32_0 = arith.constant 0 : i32
    %c0_i32_1 = arith.constant 0 : i32
    return %c0_i32, %c0_i32_0 : i32, i32
  }
  func.func @transform_2(%arg0: i32) -> (i32, i32) {
    %c0_i32 = arith.constant 0 : i32
    %c0_i32_0 = arith.constant 0 : i32
    %c0_i32_1 = arith.constant 0 : i32
    return %c0_i32, %c0_i32_0 : i32, i32
  }
  func.func @transform_3(%arg0: i32) -> (i32, i32) {
    %c0_i32 = arith.constant 0 : i32
    %c0_i32_0 = arith.constant 0 : i32
    %c0_i32_1 = arith.constant 0 : i32
    return %c0_i32, %c0_i32_0 : i32, i32
  }
  func.func @transform_4(%arg0: i32) -> (i32, i32) {
    %c0_i32 = arith.constant 0 : i32
    %c0_i32_0 = arith.constant 0 : i32
    %c0_i32_1 = arith.constant 0 : i32
    return %c0_i32, %c0_i32_0 : i32, i32
  }
  func.func @transform_5(%arg0: i32) -> (i32, i32) {
    %c0_i32 = arith.constant 0 : i32
    %c0_i32_0 = arith.constant 0 : i32
    %c0_i32_1 = arith.constant 0 : i32
    return %c0_i32, %c0_i32_0 : i32, i32
  }
  func.func @transform_6(%arg0: i32) -> (i32, i32) {
    %c0_i32 = arith.constant 0 : i32
    %c0_i32_0 = arith.constant 0 : i32
    %c0_i32_1 = arith.constant 0 : i32
    return %c0_i32, %c0_i32_0 : i32, i32
  }
  func.func @transform_7(%arg0: i32) -> (i32, i32) {
    %c0_i32 = arith.constant 0 : i32
    %c0_i32_0 = arith.constant 0 : i32
    %c0_i32_1 = arith.constant 0 : i32
    return %c0_i32, %c0_i32_0 : i32, i32
  }
  func.func @transform_8(%arg0: i32) -> (i32, i32) {
    %c0_i32 = arith.constant 0 : i32
    %c0_i32_0 = arith.constant 0 : i32
    %c0_i32_1 = arith.constant 0 : i32
    return %c0_i32, %c0_i32_0 : i32, i32
  }
  func.func @transform_9(%arg0: i32) -> (i32, i32) {
    %c0_i32 = arith.constant 0 : i32
    %c0_i32_0 = arith.constant 0 : i32
    return %arg0, %c0_i32 : i32, i32
  }
}

</mosaic_0001>

<llo_original>
// kernel: detect_multibackend_forward.1
$region0: #{detect_multibackend_forward.1}
  #allocation0 [shape = 'u32[]', space=smem, size = 0x4, offset = 0x4, fixed_abs, tag = 'smem constant byte address 0x4 - core index']
  #allocation1 [shape = 'u32[144,128]{1,0:T(1,128)}', space=vmem, size = 0x12000, scoped, tag = 'internal scratch']
  %s0 = inlined_call_operand.vmem [shape: bf16[128,27], index: 0, kind: input, shape index: {}]
  %s1 = inlined_call_operand.vmem [shape: bf16[27,32], index: 1, kind: input, shape index: {}]
  %s2 = inlined_call_operand.vmem [shape: f32[1,32], index: 2, kind: input, shape index: {}]
  %s3 = inlined_call_operand.vmem [shape: bf16[32,24], index: 3, kind: input, shape index: {}]
  %s4 = inlined_call_operand.vmem [shape: f32[1,24], index: 4, kind: input, shape index: {}]
  %s5 = inlined_call_operand.vmem [shape: f32[1,24], index: 5, kind: input, shape index: {}]
  %s6 = inlined_call_operand.vmem [shape: f32[1,24], index: 6, kind: input, shape index: {}]
  %s7 = inlined_call_operand.vmem [shape: f32[1,24], index: 7, kind: input, shape index: {}]
  %s8 = inlined_call_operand.vmem [shape: f32[1,24], index: 8, kind: input, shape index: {}]
  %s9 = inlined_call_operand.vmem [shape: f32[128,24], index: 9, kind: output, shape index: {}]
  %s10 = sld [smem:[#allocation0]]
  $region46: #{detect_multibackend_forward.1} parent=0
    _
  %s12 = ssub.s32 1, %s10
  %s13 = scalar_select 0, %s12, %s10
  // Predicated region
  $region2: #{detect_multibackend_forward.1} parent=0 // pred_check
    _
  $region3: #{detect_multibackend_forward.1} parent=0 // pred_check_branch
    %15 = sbr.rel (0) target = $region5
  $region4: #{detect_multibackend_forward.1} parent=0 // pred_region
    _
  $region5: #{detect_multibackend_forward.1} parent=0 // pred_fallthru
    _
  // Predicated region
  $region6: #{detect_multibackend_forward.1} parent=0 // pred_check
    _
  $region7: #{detect_multibackend_forward.1} parent=0 // pred_check_branch
    %17 = sbr.rel (0) target = $region9
  $region8: #{detect_multibackend_forward.1} parent=0 // pred_region
    _
  $region9: #{detect_multibackend_forward.1} parent=0 // pred_fallthru
    _
  // Predicated region
  $region10: #{detect_multibackend_forward.1} parent=0 // pred_check
    _
  $region11: #{detect_multibackend_forward.1} parent=0 // pred_check_branch
    %19 = sbr.rel (0) target = $region13
  $region12: #{detect_multibackend_forward.1} parent=0 // pred_region
    _
  $region13: #{detect_multibackend_forward.1} parent=0 // pred_fallthru
    _
  // Predicated region
  $region14: #{detect_multibackend_forward.1} parent=0 // pred_check
    _
  $region15: #{detect_multibackend_forward.1} parent=0 // pred_check_branch
    %21 = sbr.rel (0) target = $region17
  $region16: #{detect_multibackend_forward.1} parent=0 // pred_region
    _
  $region17: #{detect_multibackend_forward.1} parent=0 // pred_fallthru
    _
  // Predicated region
  $region18: #{detect_multibackend_forward.1} parent=0 // pred_check
    _
  $region19: #{detect_multibackend_forward.1} parent=0 // pred_check_branch
    %23 = sbr.rel (0) target = $region21
  $region20: #{detect_multibackend_forward.1} parent=0 // pred_region
    _
  $region21: #{detect_multibackend_forward.1} parent=0 // pred_fallthru
    _
  // Predicated region
  $region22: #{detect_multibackend_forward.1} parent=0 // pred_check
    _
  $region23: #{detect_multibackend_forward.1} parent=0 // pred_check_branch
    %25 = sbr.rel (0) target = $region25
  $region24: #{detect_multibackend_forward.1} parent=0 // pred_region
    _
  $region25: #{detect_multibackend_forward.1} parent=0 // pred_fallthru
    _
  // Predicated region
  $region26: #{detect_multibackend_forward.1} parent=0 // pred_check
    _
  $region27: #{detect_multibackend_forward.1} parent=0 // pred_check_branch
    %27 = sbr.rel (0) target = $region29
  $region28: #{detect_multibackend_forward.1} parent=0 // pred_region
    _
  $region29: #{detect_multibackend_forward.1} parent=0 // pred_fallthru
    _
  // Predicated region
  $region30: #{detect_multibackend_forward.1} parent=0 // pred_check
    _
  $region31: #{detect_multibackend_forward.1} parent=0 // pred_check_branch
    %29 = sbr.rel (0) target = $region33
  $region32: #{detect_multibackend_forward.1} parent=0 // pred_region
    _
  $region33: #{detect_multibackend_forward.1} parent=0 // pred_fallthru
    _
  // Predicated region
  $region34: #{detect_multibackend_forward.1} parent=0 // pred_check
    _
  $region35: #{detect_multibackend_forward.1} parent=0 // pred_check_branch
    %31 = sbr.rel (0) target = $region37
  $region36: #{detect_multibackend_forward.1} parent=0 // pred_region
    _
  $region37: #{detect_multibackend_forward.1} parent=0 // pred_fallthru
    _
  %v33 = vld [vmem:[%s0] sm:$0xf]
  %v34 = vld [vmem:[%s0 + $0x4] sm:$0xf]
  %v35 = vld [vmem:[%s0 + $0x8] sm:$0xf]
  %v36 = vld [vmem:[%s0 + $0xc] sm:$0xf]
  %v37 = vld [vmem:[%s0 + $0x10] sm:$0xf]
  %v38 = vld [vmem:[%s0 + $0x14] sm:$0xf]
  %v39 = vld [vmem:[%s0 + $0x18] sm:$0xf]
  %v40 = vld [vmem:[%s0 + $0x1c] sm:$0xf]
  %v41 = vld [vmem:[%s0 + $0x20] sm:$0xf]
  %v42 = vld [vmem:[%s0 + $0x24] sm:$0xf]
  %v43 = vld [vmem:[%s0 + $0x28] sm:$0xf]
  %v44 = vld [vmem:[%s0 + $0x2c] sm:$0xf]
  %v45 = vld [vmem:[%s0 + $0x30] sm:$0xf]
  %v46 = vld [vmem:[%s0 + $0x34] sm:$0xf]
  %v47 = vld [vmem:[%s0 + $0x38] sm:$0xf]
  %v48 = vld [vmem:[%s0 + $0x3c] sm:$0xf]
  %v49 = vld [vmem:[%s1] sm:$0xf]
  %v50 = vld [vmem:[%s1 + $0x4] sm:$0xf]
  %v51 = vld [vmem:[%s1 + $0x8] sm:$0xf]
  %v52 = vld [vmem:[%s1 + $0xc] sm:$0x3]
  %v53 = vld [vmem:[%s2] sm:$0x1]
  %v55 = vlaneseq
  %v56 = vshrl.u32 %v55, 7
  %v57 = vsub.s32 0, %v56
  %v58 = vrot.slane %v53, %v57
  %v76 = vunpack.c.l.b16 %v33
  %v77 = vunpack.c.l.b16 %v34
  %v78 = vunpack.c.l.b16 %v35
  %v79 = vunpack.c.l.b16 %v36
  %v80 = vunpack.c.l.b16 %v37
  %v81 = vunpack.c.l.b16 %v38
  %v82 = vunpack.c.l.b16 %v39
  %v83 = vunpack.c.l.b16 %v40
  %v84 = vunpack.c.l.b16 %v41
  %v85 = vunpack.c.l.b16 %v42
  %v86 = vunpack.c.l.b16 %v43
  %v87 = vunpack.c.l.b16 %v44
  %v88 = vunpack.c.l.b16 %v45
  %v89 = vunpack.c.l.b16 %v46
  %v90 = vunpack.c.l.b16 %v47
  %v91 = vunpack.c.l.b16 %v48
  %v92 = vpack.c.b16 %v77, %v76
  %v93 = vpack.c.b16 %v79, %v78
  %v94 = vpack.c.b16 %v81, %v80
  %v95 = vpack.c.b16 %v83, %v82
  %v96 = vpack.c.b16 %v85, %v84
  %v97 = vpack.c.b16 %v87, %v86
  %v98 = vpack.c.b16 %v89, %v88
  %v99 = vpack.c.b16 %v91, %v90
  %v104 = vunpack.c.l.b16 %v49
  %v105 = vunpack.c.l.b16 %v50
  %v106 = vunpack.c.l.b16 %v51
  %v107 = vunpack.c.l.b16 %v52
  %v108 = vpack.c.b16 %v105, %v104
  %v109 = vpack.c.b16 %v107, %v106
  %vm111 = vcmask 220160
  %v113 = vsel %vm111, %v92, 0
  %v116 = vsel %vm111, %v93, 0
  %v119 = vsel %vm111, %v94, 0
  %v122 = vsel %vm111, %v95, 0
  %v125 = vsel %vm111, %v96, 0
  %v128 = vsel %vm111, %v97, 0
  %v131 = vsel %vm111, %v98, 0
  %v134 = vsel %vm111, %v99, 0
  %vm136 = vcmask 1044480
  %vm137 = vcmask 1045504
  %v138 = vsel %vm136, 4294967295, 65535
  %v139 = vsel %vm137, %v138, 0
  %v141 = vand.u32 %v109, %v139
  %143 = vmatprep.subr.bf16.mxu0 0
  %144 = vmatpush1.bf16.msra.mxu0 0
  %145 = vmatprep.subr.bf16.mxu0 0
  %146 = vmatpush1.bf16.msra.mxu0 0
  %147 = vmatprep.subr.bf16.mxu0 0
  %148 = vmatpush1.bf16.msra.mxu0 0
  %149 = vmatprep.subr.bf16.mxu0 0
  %150 = vmatpush1.bf16.msra.mxu0 0
  %151 = vmatprep.subr.bf16.mxu0 0
  %152 = vmatpush1.bf16.msra.mxu0 0
  %153 = vmatprep.subr.bf16.mxu0 0
  %154 = vmatpush1.bf16.msra.mxu0 0
  %155 = vmatprep.subr.bf16.mxu0 0
  %156 = vmatpush1.bf16.msra.mxu0 %v141
  %157 = vmatprep.subr.bf16.mxu0 0
  %158 = vmatpush1.bf16.msra.mxu0 %v108
  %159 = vmatprep.subr.bf16.mxu0 0
  %160 = vmatpush2.bf16.msra.mxu0 0
  %161 = vmatprep.subr.bf16.mxu0 0
  %162 = vmatpush2.bf16.msra.mxu0 0
  %163 = vmatprep.subr.bf16.mxu0 0
  %164 = vmatpush2.bf16.msra.mxu0 0
  %165 = vmatprep.subr.bf16.mxu0 0
  %166 = vmatpush2.bf16.msra.mxu0 0
  %167 = vmatprep.subr.bf16.mxu0 0
  %168 = vmatpush2.bf16.msra.mxu0 0
  %169 = vmatprep.subr.bf16.mxu0 0
  %170 = vmatpush2.bf16.msra.mxu0 0
  %171 = vmatprep.subr.bf16.mxu0 0
  %172 = vmatpush2.bf16.msra.mxu0 0
  %173 = vmatprep.subr.bf16.mxu0 0
  %174 = vmatpush2.bf16.msra.mxu0 0
  %175 = vmatprep.mubr.bf16.mxu0 0
  %176 = vmatmul.mubr.bf16.gmra.mxu0 %v113
  %v177 = vpop.f32.mrf.mxu0
  %v178 = vadd.f32 %v58, %v177
  %v179 = vpop.f32.mrf.mxu0
  %v180 = vpop.f32.mrf.mxu0
  %v181 = vadd.f32 %v58, %v180
  %v182 = vpop.f32.mrf.mxu0
  %183 = vmatprep.mubr.bf16.mxu0 0
  %184 = vmatmul.mubr.bf16.gmra.mxu0 %v116
  %v185 = vpop.f32.mrf.mxu0
  %v186 = vadd.f32 %v58, %v185
  %v187 = vpop.f32.mrf.mxu0
  %v188 = vpop.f32.mrf.mxu0
  %v189 = vadd.f32 %v58, %v188
  %v190 = vpop.f32.mrf.mxu0
  %191 = vmatprep.mubr.bf16.mxu0 0
  %192 = vmatmul.mubr.bf16.gmra.mxu0 %v119
  %v193 = vpop.f32.mrf.mxu0
  %v194 = vadd.f32 %v58, %v193
  %v195 = vpop.f32.mrf.mxu0
  %v196 = vpop.f32.mrf.mxu0
  %v197 = vadd.f32 %v58, %v196
  %v198 = vpop.f32.mrf.mxu0
  %199 = vmatprep.mubr.bf16.mxu0 0
  %200 = vmatmul.mubr.bf16.gmra.mxu0 %v122
  %v201 = vpop.f32.mrf.mxu0
  %v202 = vadd.f32 %v58, %v201
  %v203 = vpop.f32.mrf.mxu0
  %v204 = vpop.f32.mrf.mxu0
  %v205 = vadd.f32 %v58, %v204
  %v206 = vpop.f32.mrf.mxu0
  %207 = vmatprep.mubr.bf16.mxu0 0
  %208 = vmatmul.mubr.bf16.gmra.mxu0 %v125
  %v209 = vpop.f32.mrf.mxu0
  %v210 = vadd.f32 %v58, %v209
  %v211 = vpop.f32.mrf.mxu0
  %v212 = vpop.f32.mrf.mxu0
  %v213 = vadd.f32 %v58, %v212
  %v214 = vpop.f32.mrf.mxu0
  %215 = vmatprep.mubr.bf16.mxu0 0
  %216 = vmatmul.mubr.bf16.gmra.mxu0 %v128
  %v217 = vpop.f32.mrf.mxu0
  %v218 = vadd.f32 %v58, %v217
  %v219 = vpop.f32.mrf.mxu0
  %v220 = vpop.f32.mrf.mxu0
  %v221 = vadd.f32 %v58, %v220
  %v222 = vpop.f32.mrf.mxu0
  %223 = vmatprep.mubr.bf16.mxu0 0
  %224 = vmatmul.mubr.bf16.gmra.mxu0 %v131
  %v225 = vpop.f32.mrf.mxu0
  %v226 = vadd.f32 %v58, %v225
  %v227 = vpop.f32.mrf.mxu0
  %v228 = vpop.f32.mrf.mxu0
  %v229 = vadd.f32 %v58, %v228
  %v230 = vpop.f32.mrf.mxu0
  %231 = vmatprep.mubr.bf16.mxu0 0
  %232 = vmatmul.mubr.bf16.gmra.mxu0 %v134
  %v233 = vpop.f32.mrf.mxu0
  %v234 = vadd.f32 %v58, %v233
  %v235 = vpop.f32.mrf.mxu0
  %v236 = vpop.f32.mrf.mxu0
  %v237 = vadd.f32 %v58, %v236
  %v238 = vpop.f32.mrf.mxu0
  %239 = vdwg.mxu0
  %v240 = vxor.u32 %v178, 2147483648
  %v241 = vxor.u32 %v181, 2147483648
  %v242 = vxor.u32 %v186, 2147483648
  %v243 = vxor.u32 %v189, 2147483648
  %v244 = vxor.u32 %v194, 2147483648
  %v245 = vxor.u32 %v197, 2147483648
  %v246 = vxor.u32 %v202, 2147483648
  %v247 = vxor.u32 %v205, 2147483648
  %v248 = vxor.u32 %v210, 2147483648
  %v249 = vxor.u32 %v213, 2147483648
  %v250 = vxor.u32 %v218, 2147483648
  %v251 = vxor.u32 %v221, 2147483648
  %v252 = vxor.u32 %v226, 2147483648
  %v253 = vxor.u32 %v229, 2147483648
  %v254 = vxor.u32 %v234, 2147483648
  %v255 = vxor.u32 %v237, 2147483648
  %v256 = vmul.f32 %v240, 1.442695
  %v257 = vpow.pop %v256
  %v258 = vmul.f32 %v241, 1.442695
  %v259 = vpow.pop %v258
  %v260 = vmul.f32 %v242, 1.442695
  %v261 = vpow.pop %v260
  %v262 = vmul.f32 %v243, 1.442695
  %v263 = vpow.pop %v262
  %v264 = vmul.f32 %v244, 1.442695
  %v265 = vpow.pop %v264
  %v266 = vmul.f32 %v245, 1.442695
  %v267 = vpow.pop %v266
  %v268 = vmul.f32 %v246, 1.442695
  %v269 = vpow.pop %v268
  %v270 = vmul.f32 %v247, 1.442695
  %v271 = vpow.pop %v270
  %v272 = vmul.f32 %v248, 1.442695
  %v273 = vpow.pop %v272
  %v274 = vmul.f32 %v249, 1.442695
  %v275 = vpow.pop %v274
  %v276 = vmul.f32 %v250, 1.442695
  %v277 = vpow.pop %v276
  %v278 = vmul.f32 %v251, 1.442695
  %v279 = vpow.pop %v278
  %v280 = vmul.f32 %v252, 1.442695
  %v281 = vpow.pop %v280
  %v282 = vmul.f32 %v253, 1.442695
  %v283 = vpow.pop %v282
  %v284 = vmul.f32 %v254, 1.442695
  %v285 = vpow.pop %v284
  %v286 = vmul.f32 %v255, 1.442695
  %v287 = vpow.pop %v286
  %v288 = vadd.f32 %v257, 1.0
  %v289 = vadd.f32 %v259, 1.0
  %v290 = vadd.f32 %v261, 1.0
  %v291 = vadd.f32 %v263, 1.0
  %v292 = vadd.f32 %v265, 1.0
  %v293 = vadd.f32 %v267, 1.0
  %v294 = vadd.f32 %v269, 1.0
  %v295 = vadd.f32 %v271, 1.0
  %v296 = vadd.f32 %v273, 1.0
  %v297 = vadd.f32 %v275, 1.0
  %v298 = vadd.f32 %v277, 1.0
  %v299 = vadd.f32 %v279, 1.0
  %v300 = vadd.f32 %v281, 1.0
  %v301 = vadd.f32 %v283, 1.0
  %v302 = vadd.f32 %v285, 1.0
  %v303 = vadd.f32 %v287, 1.0
  %v304 = vrcp.pop %v288
  %v305 = vmul.f32 1.0, %v304
  %v306 = vrcp.pop %v289
  %v307 = vmul.f32 1.0, %v306
  %v308 = vrcp.pop %v290
  %v309 = vmul.f32 1.0, %v308
  %v310 = vrcp.pop %v291
  %v311 = vmul.f32 1.0, %v310
  %v312 = vrcp.pop %v292
  %v313 = vmul.f32 1.0, %v312
  %v314 = vrcp.pop %v293
  %v315 = vmul.f32 1.0, %v314
  %v316 = vrcp.pop %v294
  %v317 = vmul.f32 1.0, %v316
  %v318 = vrcp.pop %v295
  %v319 = vmul.f32 1.0, %v318
  %v320 = vrcp.pop %v296
  %v321 = vmul.f32 1.0, %v320
  %v322 = vrcp.pop %v297
  %v323 = vmul.f32 1.0, %v322
  %v324 = vrcp.pop %v298
  %v325 = vmul.f32 1.0, %v324
  %v326 = vrcp.pop %v299
  %v327 = vmul.f32 1.0, %v326
  %v328 = vrcp.pop %v300
  %v329 = vmul.f32 1.0, %v328
  %v330 = vrcp.pop %v301
  %v331 = vmul.f32 1.0, %v330
  %v332 = vrcp.pop %v302
  %v333 = vmul.f32 1.0, %v332
  %v334 = vrcp.pop %v303
  %v335 = vmul.f32 1.0, %v334
  %v336 = vmul.f32 %v178, %v305
  %v337 = vmul.f32 %v181, %v307
  %v338 = vmul.f32 %v186, %v309
  %v339 = vmul.f32 %v189, %v311
  %v340 = vmul.f32 %v194, %v313
  %v341 = vmul.f32 %v197, %v315
  %v342 = vmul.f32 %v202, %v317
  %v343 = vmul.f32 %v205, %v319
  %v344 = vmul.f32 %v210, %v321
  %v345 = vmul.f32 %v213, %v323
  %v346 = vmul.f32 %v218, %v325
  %v347 = vmul.f32 %v221, %v327
  %v348 = vmul.f32 %v226, %v329
  %v349 = vmul.f32 %v229, %v331
  %v350 = vmul.f32 %v234, %v333
  %v351 = vmul.f32 %v237, %v335
  %v352 = vpack.c.bf16 %v337, %v336
  %v353 = vpack.c.bf16 %v339, %v338
  %v354 = vpack.c.bf16 %v341, %v340
  %v355 = vpack.c.bf16 %v343, %v342
  %v356 = vpack.c.bf16 %v345, %v344
  %v357 = vpack.c.bf16 %v347, %v346
  %v358 = vpack.c.bf16 %v349, %v348
  %v359 = vpack.c.bf16 %v351, %v350
  %v360 = vld [vmem:[%s3] sm:$0xf]
  %v361 = vld [vmem:[%s3 + $0x4] sm:$0xf]
  %v362 = vld [vmem:[%s3 + $0x8] sm:$0xf]
  %v363 = vld [vmem:[%s3 + $0xc] sm:$0xf]
  %v364 = vld [vmem:[%s4] sm:$0x1]
  %v366 = vlaneseq
  %v367 = vshrl.u32 %v366, 7
  %v368 = vsub.s32 0, %v367
  %v369 = vrot.slane %v364, %v368
  %v375 = vunpack.c.l.b16 %v360
  %v376 = vunpack.c.l.b16 %v361
  %v377 = vunpack.c.l.b16 %v362
  %v378 = vunpack.c.l.b16 %v363
  %v379 = vpack.c.b16 %v376, %v375
  %v380 = vpack.c.b16 %v378, %v377
  %vm383 = vcmask 261120
  %v385 = vsel %vm383, %v352, 0
  %v388 = vsel %vm383, %v353, 0
  %v391 = vsel %vm383, %v354, 0
  %v394 = vsel %vm383, %v355, 0
  %v397 = vsel %vm383, %v356, 0
  %v400 = vsel %vm383, %v357, 0
  %v403 = vsel %vm383, %v358, 0
  %v406 = vsel %vm383, %v359, 0
  %408 = vmatprep.subr.bf16.mxu0 0
  %409 = vmatpush1.bf16.msra.mxu0 0
  %410 = vmatprep.subr.bf16.mxu0 0
  %411 = vmatpush1.bf16.msra.mxu0 0
  %412 = vmatprep.subr.bf16.mxu0 0
  %413 = vmatpush1.bf16.msra.mxu0 0
  %414 = vmatprep.subr.bf16.mxu0 0
  %415 = vmatpush1.bf16.msra.mxu0 0
  %416 = vmatprep.subr.bf16.mxu0 0
  %417 = vmatpush1.bf16.msra.mxu0 0
  %418 = vmatprep.subr.bf16.mxu0 0
  %419 = vmatpush1.bf16.msra.mxu0 0
  %420 = vmatprep.subr.bf16.mxu0 0
  %421 = vmatpush1.bf16.msra.mxu0 %v380
  %422 = vmatprep.subr.bf16.mxu0 0
  %423 = vmatpush1.bf16.msra.mxu0 %v379
  %424 = vmatprep.subr.bf16.mxu0 0
  %425 = vmatpush2.bf16.msra.mxu0 0
  %426 = vmatprep.subr.bf16.mxu0 0
  %427 = vmatpush2.bf16.msra.mxu0 0
  %428 = vmatprep.subr.bf16.mxu0 0
  %429 = vmatpush2.bf16.msra.mxu0 0
  %430 = vmatprep.subr.bf16.mxu0 0
  %431 = vmatpush2.bf16.msra.mxu0 0
  %432 = vmatprep.subr.bf16.mxu0 0
  %433 = vmatpush2.bf16.msra.mxu0 0
  %434 = vmatprep.subr.bf16.mxu0 0
  %435 = vmatpush2.bf16.msra.mxu0 0
  %436 = vmatprep.subr.bf16.mxu0 0
  %437 = vmatpush2.bf16.msra.mxu0 0
  %438 = vmatprep.subr.bf16.mxu0 0
  %439 = vmatpush2.bf16.msra.mxu0 0
  %440 = vmatprep.mubr.bf16.mxu0 0
  %441 = vmatmul.mubr.bf16.gmra.mxu0 %v385
  %v442 = vpop.f32.mrf.mxu0
  %v443 = vadd.f32 %v369, %v442
  %v444 = vpop.f32.mrf.mxu0
  %v445 = vpop.f32.mrf.mxu0
  %v446 = vadd.f32 %v369, %v445
  %v447 = vpop.f32.mrf.mxu0
  %448 = vmatprep.mubr.bf16.mxu0 0
  %449 = vmatmul.mubr.bf16.gmra.mxu0 %v388
  %v450 = vpop.f32.mrf.mxu0
  %v451 = vadd.f32 %v369, %v450
  %v452 = vpop.f32.mrf.mxu0
  %v453 = vpop.f32.mrf.mxu0
  %v454 = vadd.f32 %v369, %v453
  %v455 = vpop.f32.mrf.mxu0
  %456 = vmatprep.mubr.bf16.mxu0 0
  %457 = vmatmul.mubr.bf16.gmra.mxu0 %v391
  %v458 = vpop.f32.mrf.mxu0
  %v459 = vadd.f32 %v369, %v458
  %v460 = vpop.f32.mrf.mxu0
  %v461 = vpop.f32.mrf.mxu0
  %v462 = vadd.f32 %v369, %v461
  %v463 = vpop.f32.mrf.mxu0
  %464 = vmatprep.mubr.bf16.mxu0 0
  %465 = vmatmul.mubr.bf16.gmra.mxu0 %v394
  %v466 = vpop.f32.mrf.mxu0
  %v467 = vadd.f32 %v369, %v466
  %v468 = vpop.f32.mrf.mxu0
  %v469 = vpop.f32.mrf.mxu0
  %v470 = vadd.f32 %v369, %v469
  %v471 = vpop.f32.mrf.mxu0
  %472 = vmatprep.mubr.bf16.mxu0 0
  %473 = vmatmul.mubr.bf16.gmra.mxu0 %v397
  %v474 = vpop.f32.mrf.mxu0
  %v475 = vadd.f32 %v369, %v474
  %v476 = vpop.f32.mrf.mxu0
  %v477 = vpop.f32.mrf.mxu0
  %v478 = vadd.f32 %v369, %v477
  %v479 = vpop.f32.mrf.mxu0
  %480 = vmatprep.mubr.bf16.mxu0 0
  %481 = vmatmul.mubr.bf16.gmra.mxu0 %v400
  %v482 = vpop.f32.mrf.mxu0
  %v483 = vadd.f32 %v369, %v482
  %v484 = vpop.f32.mrf.mxu0
  %v485 = vpop.f32.mrf.mxu0
  %v486 = vadd.f32 %v369, %v485
  %v487 = vpop.f32.mrf.mxu0
  %488 = vmatprep.mubr.bf16.mxu0 0
  %489 = vmatmul.mubr.bf16.gmra.mxu0 %v403
  %v490 = vpop.f32.mrf.mxu0
  %v491 = vadd.f32 %v369, %v490
  %v492 = vpop.f32.mrf.mxu0
  %v493 = vpop.f32.mrf.mxu0
  %v494 = vadd.f32 %v369, %v493
  %v495 = vpop.f32.mrf.mxu0
  %496 = vmatprep.mubr.bf16.mxu0 0
  %497 = vmatmul.mubr.bf16.gmra.mxu0 %v406
  %v498 = vpop.f32.mrf.mxu0
  %v499 = vadd.f32 %v369, %v498
  %v500 = vpop.f32.mrf.mxu0
  %v501 = vpop.f32.mrf.mxu0
  %v502 = vadd.f32 %v369, %v501
  %v503 = vpop.f32.mrf.mxu0
  %504 = vdwg.mxu0
  %v505 = vxor.u32 %v443, 2147483648
  %v506 = vxor.u32 %v446, 2147483648
  %v507 = vxor.u32 %v451, 2147483648
  %v508 = vxor.u32 %v454, 2147483648
  %v509 = vxor.u32 %v459, 2147483648
  %v510 = vxor.u32 %v462, 2147483648
  %v511 = vxor.u32 %v467, 2147483648
  %v512 = vxor.u32 %v470, 2147483648
  %v513 = vxor.u32 %v475, 2147483648
  %v514 = vxor.u32 %v478, 2147483648
  %v515 = vxor.u32 %v483, 2147483648
  %v516 = vxor.u32 %v486, 2147483648
  %v517 = vxor.u32 %v491, 2147483648
  %v518 = vxor.u32 %v494, 2147483648
  %v519 = vxor.u32 %v499, 2147483648
  %v520 = vxor.u32 %v502, 2147483648
  %v521 = vmul.f32 %v505, 1.442695
  %v522 = vpow.pop %v521
  %v523 = vmul.f32 %v506, 1.442695
  %v524 = vpow.pop %v523
  %v525 = vmul.f32 %v507, 1.442695
  %v526 = vpow.pop %v525
  %v527 = vmul.f32 %v508, 1.442695
  %v528 = vpow.pop %v527
  %v529 = vmul.f32 %v509, 1.442695
  %v530 = vpow.pop %v529
  %v531 = vmul.f32 %v510, 1.442695
  %v532 = vpow.pop %v531
  %v533 = vmul.f32 %v511, 1.442695
  %v534 = vpow.pop %v533
  %v535 = vmul.f32 %v512, 1.442695
  %v536 = vpow.pop %v535
  %v537 = vmul.f32 %v513, 1.442695
  %v538 = vpow.pop %v537
  %v539 = vmul.f32 %v514, 1.442695
  %v540 = vpow.pop %v539
  %v541 = vmul.f32 %v515, 1.442695
  %v542 = vpow.pop %v541
  %v543 = vmul.f32 %v516, 1.442695
  %v544 = vpow.pop %v543
  %v545 = vmul.f32 %v517, 1.442695
  %v546 = vpow.pop %v545
  %v547 = vmul.f32 %v518, 1.442695
  %v548 = vpow.pop %v547
  %v549 = vmul.f32 %v519, 1.442695
  %v550 = vpow.pop %v549
  %v551 = vmul.f32 %v520, 1.442695
  %v552 = vpow.pop %v551
  %v553 = vadd.f32 %v522, 1.0
  %v554 = vadd.f32 %v524, 1.0
  %v555 = vadd.f32 %v526, 1.0
  %v556 = vadd.f32 %v528, 1.0
  %v557 = vadd.f32 %v530, 1.0
  %v558 = vadd.f32 %v532, 1.0
  %v559 = vadd.f32 %v534, 1.0
  %v560 = vadd.f32 %v536, 1.0
  %v561 = vadd.f32 %v538, 1.0
  %v562 = vadd.f32 %v540, 1.0
  %v563 = vadd.f32 %v542, 1.0
  %v564 = vadd.f32 %v544, 1.0
  %v565 = vadd.f32 %v546, 1.0
  %v566 = vadd.f32 %v548, 1.0
  %v567 = vadd.f32 %v550, 1.0
  %v568 = vadd.f32 %v552, 1.0
  %v569 = vrcp.pop %v553
  %v570 = vmul.f32 1.0, %v569
  %v571 = vrcp.pop %v554
  %v572 = vmul.f32 1.0, %v571
  %v573 = vrcp.pop %v555
  %v574 = vmul.f32 1.0, %v573
  %v575 = vrcp.pop %v556
  %v576 = vmul.f32 1.0, %v575
  %v577 = vrcp.pop %v557
  %v578 = vmul.f32 1.0, %v577
  %v579 = vrcp.pop %v558
  %v580 = vmul.f32 1.0, %v579
  %v581 = vrcp.pop %v559
  %v582 = vmul.f32 1.0, %v581
  %v583 = vrcp.pop %v560
  %v584 = vmul.f32 1.0, %v583
  %v585 = vrcp.pop %v561
  %v586 = vmul.f32 1.0, %v585
  %v587 = vrcp.pop %v562
  %v588 = vmul.f32 1.0, %v587
  %v589 = vrcp.pop %v563
  %v590 = vmul.f32 1.0, %v589
  %v591 = vrcp.pop %v564
  %v592 = vmul.f32 1.0, %v591
  %v593 = vrcp.pop %v565
  %v594 = vmul.f32 1.0, %v593
  %v595 = vrcp.pop %v566
  %v596 = vmul.f32 1.0, %v595
  %v597 = vrcp.pop %v567
  %v598 = vmul.f32 1.0, %v597
  %v599 = vrcp.pop %v568
  %v600 = vmul.f32 1.0, %v599
  %s601 = smul.u32 0, 128
  %v602 = vlaneseq
  %v603 = vshrl.u32 %v602, 7
  %v604 = vadd.s32 %v603, 8
  %v605 = vadd.s32 %v603, 16
  %v606 = vadd.s32 %v603, 24
  %v607 = vadd.s32 %v603, 32
  %v608 = vadd.s32 %v603, 40
  %v609 = vadd.s32 %v603, 48
  %v610 = vadd.s32 %v603, 56
  %v611 = vadd.s32 %v603, 64
  %v612 = vadd.s32 %v603, 72
  %v613 = vadd.s32 %v603, 80
  %v614 = vadd.s32 %v603, 88
  %v615 = vadd.s32 %v603, 96
  %v616 = vadd.s32 %v603, 104
  %v617 = vadd.s32 %v603, 112
  %v618 = vadd.s32 %v603, 120
  %v619 = vstv %s601
  %v620 = vadd.s32 %v619, %v603
  %v621 = vadd.s32 %v619, %v604
  %v622 = vadd.s32 %v619, %v605
  %v623 = vadd.s32 %v619, %v606
  %v624 = vadd.s32 %v619, %v607
  %v625 = vadd.s32 %v619, %v608
  %v626 = vadd.s32 %v619, %v609
  %v627 = vadd.s32 %v619, %v610
  %v628 = vadd.s32 %v619, %v611
  %v629 = vadd.s32 %v619, %v612
  %v630 = vadd.s32 %v619, %v613
  %v631 = vadd.s32 %v619, %v614
  %v632 = vadd.s32 %v619, %v615
  %v633 = vadd.s32 %v619, %v616
  %v634 = vadd.s32 %v619, %v617
  %v635 = vadd.s32 %v619, %v618
  %v636 = vcvt.s32.f32 %v620
  %v637 = vcvt.s32.f32 %v621
  %v638 = vcvt.s32.f32 %v622
  %v639 = vcvt.s32.f32 %v623
  %v640 = vcvt.s32.f32 %v624
  %v641 = vcvt.s32.f32 %v625
  %v642 = vcvt.s32.f32 %v626
  %v643 = vcvt.s32.f32 %v627
  %v644 = vcvt.s32.f32 %v628
  %v645 = vcvt.s32.f32 %v629
  %v646 = vcvt.s32.f32 %v630
  %v647 = vcvt.s32.f32 %v631
  %v648 = vcvt.s32.f32 %v632
  %v649 = vcvt.s32.f32 %v633
  %v650 = vcvt.s32.f32 %v634
  %v651 = vcvt.s32.f32 %v635
  %v652 = vrcp.pop 8.0
  %v653 = vmul.f32 %v636, %v652
  %v654 = vmul.f32 %v637, %v652
  %v655 = vmul.f32 %v638, %v652
  %v656 = vmul.f32 %v639, %v652
  %v657 = vmul.f32 %v640, %v652
  %v658 = vmul.f32 %v641, %v652
  %v659 = vmul.f32 %v642, %v652
  %v660 = vmul.f32 %v643, %v652
  %v661 = vmul.f32 %v644, %v652
  %v662 = vmul.f32 %v645, %v652
  %v663 = vmul.f32 %v646, %v652
  %v664 = vmul.f32 %v647, %v652
  %v665 = vmul.f32 %v648, %v652
  %v666 = vmul.f32 %v649, %v652
  %v667 = vmul.f32 %v650, %v652
  %v668 = vmul.f32 %v651, %v652
  %v669 = vfloor.f32 %v653
  %v670 = vfloor.f32 %v654
  %v671 = vfloor.f32 %v655
  %v672 = vfloor.f32 %v656
  %v673 = vfloor.f32 %v657
  %v674 = vfloor.f32 %v658
  %v675 = vfloor.f32 %v659
  %v676 = vfloor.f32 %v660
  %v677 = vfloor.f32 %v661
  %v678 = vfloor.f32 %v662
  %v679 = vfloor.f32 %v663
  %v680 = vfloor.f32 %v664
  %v681 = vfloor.f32 %v665
  %v682 = vfloor.f32 %v666
  %v683 = vfloor.f32 %v667
  %v684 = vfloor.f32 %v668
  %v685 = vmul.f32 %v669, 8.0
  %v686 = vmul.f32 %v670, 8.0
  %v687 = vmul.f32 %v671, 8.0
  %v688 = vmul.f32 %v672, 8.0
  %v689 = vmul.f32 %v673, 8.0
  %v690 = vmul.f32 %v674, 8.0
  %v691 = vmul.f32 %v675, 8.0
  %v692 = vmul.f32 %v676, 8.0
  %v693 = vmul.f32 %v677, 8.0
  %v694 = vmul.f32 %v678, 8.0
  %v695 = vmul.f32 %v679, 8.0
  %v696 = vmul.f32 %v680, 8.0
  %v697 = vmul.f32 %v681, 8.0
  %v698 = vmul.f32 %v682, 8.0
  %v699 = vmul.f32 %v683, 8.0
  %v700 = vmul.f32 %v684, 8.0
  %v701 = vsub.f32 %v636, %v685
  %v702 = vsub.f32 %v637, %v686
  %v703 = vsub.f32 %v638, %v687
  %v704 = vsub.f32 %v639, %v688
  %v705 = vsub.f32 %v640, %v689
  %v706 = vsub.f32 %v641, %v690
  %v707 = vsub.f32 %v642, %v691
  %v708 = vsub.f32 %v643, %v692
  %v709 = vsub.f32 %v644, %v693
  %v710 = vsub.f32 %v645, %v694
  %v711 = vsub.f32 %v646, %v695
  %v712 = vsub.f32 %v647, %v696
  %v713 = vsub.f32 %v648, %v697
  %v714 = vsub.f32 %v649, %v698
  %v715 = vsub.f32 %v650, %v699
  %v716 = vsub.f32 %v651, %v700
  %v717 = vmul.f32 %v669, %v652
  %v718 = vmul.f32 %v670, %v652
  %v719 = vmul.f32 %v671, %v652
  %v720 = vmul.f32 %v672, %v652
  %v721 = vmul.f32 %v673, %v652
  %v722 = vmul.f32 %v674, %v652
  %v723 = vmul.f32 %v675, %v652
  %v724 = vmul.f32 %v676, %v652
  %v725 = vmul.f32 %v677, %v652
  %v726 = vmul.f32 %v678, %v652
  %v727 = vmul.f32 %v679, %v652
  %v728 = vmul.f32 %v680, %v652
  %v729 = vmul.f32 %v681, %v652
  %v730 = vmul.f32 %v682, %v652
  %v731 = vmul.f32 %v683, %v652
  %v732 = vmul.f32 %v684, %v652
  %v733 = vfloor.f32 %v717
  %v734 = vfloor.f32 %v718
  %v735 = vfloor.f32 %v719
  %v736 = vfloor.f32 %v720
  %v737 = vfloor.f32 %v721
  %v738 = vfloor.f32 %v722
  %v739 = vfloor.f32 %v723
  %v740 = vfloor.f32 %v724
  %v741 = vfloor.f32 %v725
  %v742 = vfloor.f32 %v726
  %v743 = vfloor.f32 %v727
  %v744 = vfloor.f32 %v728
  %v745 = vfloor.f32 %v729
  %v746 = vfloor.f32 %v730
  %v747 = vfloor.f32 %v731
  %v748 = vfloor.f32 %v732
  %v749 = vmul.f32 %v733, 8.0
  %v750 = vmul.f32 %v734, 8.0
  %v751 = vmul.f32 %v735, 8.0
  %v752 = vmul.f32 %v736, 8.0
  %v753 = vmul.f32 %v737, 8.0
  %v754 = vmul.f32 %v738, 8.0
  %v755 = vmul.f32 %v739, 8.0
  %v756 = vmul.f32 %v740, 8.0
  %v757 = vmul.f32 %v741, 8.0
  %v758 = vmul.f32 %v742, 8.0
  %v759 = vmul.f32 %v743, 8.0
  %v760 = vmul.f32 %v744, 8.0
  %v761 = vmul.f32 %v745, 8.0
  %v762 = vmul.f32 %v746, 8.0
  %v763 = vmul.f32 %v747, 8.0
  %v764 = vmul.f32 %v748, 8.0
  %v765 = vsub.f32 %v669, %v749
  %v766 = vsub.f32 %v670, %v750
  %v767 = vsub.f32 %v671, %v751
  %v768 = vsub.f32 %v672, %v752
  %v769 = vsub.f32 %v673, %v753
  %v770 = vsub.f32 %v674, %v754
  %v771 = vsub.f32 %v675, %v755
  %v772 = vsub.f32 %v676, %v756
  %v773 = vsub.f32 %v677, %v757
  %v774 = vsub.f32 %v678, %v758
  %v775 = vsub.f32 %v679, %v759
  %v776 = vsub.f32 %v680, %v760
  %v777 = vsub.f32 %v681, %v761
  %v778 = vsub.f32 %v682, %v762
  %v779 = vsub.f32 %v683, %v763
  %v780 = vsub.f32 %v684, %v764
  %v781 = vsub.f32 %v701, 0.5
  %v782 = vsub.f32 %v702, 0.5
  %v783 = vsub.f32 %v703, 0.5
  %v784 = vsub.f32 %v704, 0.5
  %v785 = vsub.f32 %v705, 0.5
  %v786 = vsub.f32 %v706, 0.5
  %v787 = vsub.f32 %v707, 0.5
  %v788 = vsub.f32 %v708, 0.5
  %v789 = vsub.f32 %v709, 0.5
  %v790 = vsub.f32 %v710, 0.5
  %v791 = vsub.f32 %v711, 0.5
  %v792 = vsub.f32 %v712, 0.5
  %v793 = vsub.f32 %v713, 0.5
  %v794 = vsub.f32 %v714, 0.5
  %v795 = vsub.f32 %v715, 0.5
  %v796 = vsub.f32 %v716, 0.5
  %v797 = vmul.f32 %v781, 2.0
  %v798 = vmul.f32 %v782, 2.0
  %v799 = vmul.f32 %v783, 2.0
  %v800 = vmul.f32 %v784, 2.0
  %v801 = vmul.f32 %v785, 2.0
  %v802 = vmul.f32 %v786, 2.0
  %v803 = vmul.f32 %v787, 2.0
  %v804 = vmul.f32 %v788, 2.0
  %v805 = vmul.f32 %v789, 2.0
  %v806 = vmul.f32 %v790, 2.0
  %v807 = vmul.f32 %v791, 2.0
  %v808 = vmul.f32 %v792, 2.0
  %v809 = vmul.f32 %v793, 2.0
  %v810 = vmul.f32 %v794, 2.0
  %v811 = vmul.f32 %v795, 2.0
  %v812 = vmul.f32 %v796, 2.0
  %v813 = vld [vmem:[%s6] sm:$0x1]
  %v815 = vlaneseq
  %v816 = vshrl.u32 %v815, 7
  %v817 = vsub.s32 0, %v816
  %v818 = vrot.slane %v813, %v817
  %v820 = vmul.f32 %v797, %v818
  %v821 = vmul.f32 %v798, %v818
  %v822 = vmul.f32 %v799, %v818
  %v823 = vmul.f32 %v800, %v818
  %v824 = vmul.f32 %v801, %v818
  %v825 = vmul.f32 %v802, %v818
  %v826 = vmul.f32 %v803, %v818
  %v827 = vmul.f32 %v804, %v818
  %v828 = vmul.f32 %v805, %v818
  %v829 = vmul.f32 %v806, %v818
  %v830 = vmul.f32 %v807, %v818
  %v831 = vmul.f32 %v808, %v818
  %v832 = vmul.f32 %v809, %v818
  %v833 = vmul.f32 %v810, %v818
  %v834 = vmul.f32 %v811, %v818
  %v835 = vmul.f32 %v812, %v818
  %v836 = vsub.f32 %v765, 0.5
  %v837 = vsub.f32 %v766, 0.5
  %v838 = vsub.f32 %v767, 0.5
  %v839 = vsub.f32 %v768, 0.5
  %v840 = vsub.f32 %v769, 0.5
  %v841 = vsub.f32 %v770, 0.5
  %v842 = vsub.f32 %v771, 0.5
  %v843 = vsub.f32 %v772, 0.5
  %v844 = vsub.f32 %v773, 0.5
  %v845 = vsub.f32 %v774, 0.5
  %v846 = vsub.f32 %v775, 0.5
  %v847 = vsub.f32 %v776, 0.5
  %v848 = vsub.f32 %v777, 0.5
  %v849 = vsub.f32 %v778, 0.5
  %v850 = vsub.f32 %v779, 0.5
  %v851 = vsub.f32 %v780, 0.5
  %v852 = vmul.f32 %v836, 2.0
  %v853 = vmul.f32 %v837, 2.0
  %v854 = vmul.f32 %v838, 2.0
  %v855 = vmul.f32 %v839, 2.0
  %v856 = vmul.f32 %v840, 2.0
  %v857 = vmul.f32 %v841, 2.0
  %v858 = vmul.f32 %v842, 2.0
  %v859 = vmul.f32 %v843, 2.0
  %v860 = vmul.f32 %v844, 2.0
  %v861 = vmul.f32 %v845, 2.0
  %v862 = vmul.f32 %v846, 2.0
  %v863 = vmul.f32 %v847, 2.0
  %v864 = vmul.f32 %v848, 2.0
  %v865 = vmul.f32 %v849, 2.0
  %v866 = vmul.f32 %v850, 2.0
  %v867 = vmul.f32 %v851, 2.0
  %v868 = vld [vmem:[%s7] sm:$0x1]
  %v870 = vlaneseq
  %v871 = vshrl.u32 %v870, 7
  %v872 = vsub.s32 0, %v871
  %v873 = vrot.slane %v868, %v872
  %v875 = vmul.f32 %v852, %v873
  %v876 = vmul.f32 %v853, %v873
  %v877 = vmul.f32 %v854, %v873
  %v878 = vmul.f32 %v855, %v873
  %v879 = vmul.f32 %v856, %v873
  %v880 = vmul.f32 %v857, %v873
  %v881 = vmul.f32 %v858, %v873
  %v882 = vmul.f32 %v859, %v873
  %v883 = vmul.f32 %v860, %v873
  %v884 = vmul.f32 %v861, %v873
  %v885 = vmul.f32 %v862, %v873
  %v886 = vmul.f32 %v863, %v873
  %v887 = vmul.f32 %v864, %v873
  %v888 = vmul.f32 %v865, %v873
  %v889 = vmul.f32 %v866, %v873
  %v890 = vmul.f32 %v867, %v873
  %v891 = vadd.f32 %v820, %v875
  %v892 = vadd.f32 %v821, %v876
  %v893 = vadd.f32 %v822, %v877
  %v894 = vadd.f32 %v823, %v878
  %v895 = vadd.f32 %v824, %v879
  %v896 = vadd.f32 %v825, %v880
  %v897 = vadd.f32 %v826, %v881
  %v898 = vadd.f32 %v827, %v882
  %v899 = vadd.f32 %v828, %v883
  %v900 = vadd.f32 %v829, %v884
  %v901 = vadd.f32 %v830, %v885
  %v902 = vadd.f32 %v831, %v886
  %v903 = vadd.f32 %v832, %v887
  %v904 = vadd.f32 %v833, %v888
  %v905 = vadd.f32 %v834, %v889
  %v906 = vadd.f32 %v835, %v890
  %v907 = vmul.f32 %v570, 4.0
  %v908 = vmul.f32 %v572, 4.0
  %v909 = vmul.f32 %v574, 4.0
  %v910 = vmul.f32 %v576, 4.0
  %v911 = vmul.f32 %v578, 4.0
  %v912 = vmul.f32 %v580, 4.0
  %v913 = vmul.f32 %v582, 4.0
  %v914 = vmul.f32 %v584, 4.0
  %v915 = vmul.f32 %v586, 4.0
  %v916 = vmul.f32 %v588, 4.0
  %v917 = vmul.f32 %v590, 4.0
  %v918 = vmul.f32 %v592, 4.0
  %v919 = vmul.f32 %v594, 4.0
  %v920 = vmul.f32 %v596, 4.0
  %v921 = vmul.f32 %v598, 4.0
  %v922 = vmul.f32 %v600, 4.0
  %v923 = vadd.f32 %v907, %v891
  %v924 = vadd.f32 %v908, %v892
  %v925 = vadd.f32 %v909, %v893
  %v926 = vadd.f32 %v910, %v894
  %v927 = vadd.f32 %v911, %v895
  %v928 = vadd.f32 %v912, %v896
  %v929 = vadd.f32 %v913, %v897
  %v930 = vadd.f32 %v914, %v898
  %v931 = vadd.f32 %v915, %v899
  %v932 = vadd.f32 %v916, %v900
  %v933 = vadd.f32 %v917, %v901
  %v934 = vadd.f32 %v918, %v902
  %v935 = vadd.f32 %v919, %v903
  %v936 = vadd.f32 %v920, %v904
  %v937 = vadd.f32 %v921, %v905
  %v938 = vadd.f32 %v922, %v906
  %v939 = vmul.f32 %v570, 2.0
  %v940 = vmul.f32 %v572, 2.0
  %v941 = vmul.f32 %v574, 2.0
  %v942 = vmul.f32 %v576, 2.0
  %v943 = vmul.f32 %v578, 2.0
  %v944 = vmul.f32 %v580, 2.0
  %v945 = vmul.f32 %v582, 2.0
  %v946 = vmul.f32 %v584, 2.0
  %v947 = vmul.f32 %v586, 2.0
  %v948 = vmul.f32 %v588, 2.0
  %v949 = vmul.f32 %v590, 2.0
  %v950 = vmul.f32 %v592, 2.0
  %v951 = vmul.f32 %v594, 2.0
  %v952 = vmul.f32 %v596, 2.0
  %v953 = vmul.f32 %v598, 2.0
  %v954 = vmul.f32 %v600, 2.0
  %v955 = vmul.f32 %v939, %v939
  %v956 = vmul.f32 %v940, %v940
  %v957 = vmul.f32 %v941, %v941
  %v958 = vmul.f32 %v942, %v942
  %v959 = vmul.f32 %v943, %v943
  %v960 = vmul.f32 %v944, %v944
  %v961 = vmul.f32 %v945, %v945
  %v962 = vmul.f32 %v946, %v946
  %v963 = vmul.f32 %v947, %v947
  %v964 = vmul.f32 %v948, %v948
  %v965 = vmul.f32 %v949, %v949
  %v966 = vmul.f32 %v950, %v950
  %v967 = vmul.f32 %v951, %v951
  %v968 = vmul.f32 %v952, %v952
  %v969 = vmul.f32 %v953, %v953
  %v970 = vmul.f32 %v954, %v954
  %v971 = vld [vmem:[%s5] sm:$0x1]
  %v973 = vlaneseq
  %v974 = vshrl.u32 %v973, 7
  %v975 = vsub.s32 0, %v974
  %v976 = vrot.slane %v971, %v975
  %v978 = vmul.f32 %v955, %v976
  %v979 = vmul.f32 %v956, %v976
  %v980 = vmul.f32 %v957, %v976
  %v981 = vmul.f32 %v958, %v976
  %v982 = vmul.f32 %v959, %v976
  %v983 = vmul.f32 %v960, %v976
  %v984 = vmul.f32 %v961, %v976
  %v985 = vmul.f32 %v962, %v976
  %v986 = vmul.f32 %v963, %v976
  %v987 = vmul.f32 %v964, %v976
  %v988 = vmul.f32 %v965, %v976
  %v989 = vmul.f32 %v966, %v976
  %v990 = vmul.f32 %v967, %v976
  %v991 = vmul.f32 %v968, %v976
  %v992 = vmul.f32 %v969, %v976
  %v993 = vmul.f32 %v970, %v976
  %v994 = vadd.f32 %v813, %v868
  %v995 = vsub.f32 1.0, %v994
  %v996 = vld [vmem:[%s8] sm:$0x1]
  %v997 = vsub.f32 %v995, %v996
  %v999 = vlaneseq
  %v1000 = vshrl.u32 %v999, 7
  %v1001 = vsub.s32 0, %v1000
  %v1002 = vrot.slane %v994, %v1001
  %v1004 = vmul.f32 %v1002, %v923
  %v1005 = vmul.f32 %v1002, %v924
  %v1006 = vmul.f32 %v1002, %v925
  %v1007 = vmul.f32 %v1002, %v926
  %v1008 = vmul.f32 %v1002, %v927
  %v1009 = vmul.f32 %v1002, %v928
  %v1010 = vmul.f32 %v1002, %v929
  %v1011 = vmul.f32 %v1002, %v930
  %v1012 = vmul.f32 %v1002, %v931
  %v1013 = vmul.f32 %v1002, %v932
  %v1014 = vmul.f32 %v1002, %v933
  %v1015 = vmul.f32 %v1002, %v934
  %v1016 = vmul.f32 %v1002, %v935
  %v1017 = vmul.f32 %v1002, %v936
  %v1018 = vmul.f32 %v1002, %v937
  %v1019 = vmul.f32 %v1002, %v938
  %v1021 = vlaneseq
  %v1022 = vshrl.u32 %v1021, 7
  %v1023 = vsub.s32 0, %v1022
  %v1024 = vrot.slane %v996, %v1023
  %v1026 = vmul.f32 %v1024, %v978
  %v1027 = vmul.f32 %v1024, %v979
  %v1028 = vmul.f32 %v1024, %v980
  %v1029 = vmul.f32 %v1024, %v981
  %v1030 = vmul.f32 %v1024, %v982
  %v1031 = vmul.f32 %v1024, %v983
  %v1032 = vmul.f32 %v1024, %v984
  %v1033 = vmul.f32 %v1024, %v985
  %v1034 = vmul.f32 %v1024, %v986
  %v1035 = vmul.f32 %v1024, %v987
  %v1036 = vmul.f32 %v1024, %v988
  %v1037 = vmul.f32 %v1024, %v989
  %v1038 = vmul.f32 %v1024, %v990
  %v1039 = vmul.f32 %v1024, %v991
  %v1040 = vmul.f32 %v1024, %v992
  %v1041 = vmul.f32 %v1024, %v993
  %v1042 = vadd.f32 %v1004, %v1026
  %v1043 = vadd.f32 %v1005, %v1027
  %v1044 = vadd.f32 %v1006, %v1028
  %v1045 = vadd.f32 %v1007, %v1029
  %v1046 = vadd.f32 %v1008, %v1030
  %v1047 = vadd.f32 %v1009, %v1031
  %v1048 = vadd.f32 %v1010, %v1032
  %v1049 = vadd.f32 %v1011, %v1033
  %v1050 = vadd.f32 %v1012, %v1034
  %v1051 = vadd.f32 %v1013, %v1035
  %v1052 = vadd.f32 %v1014, %v1036
  %v1053 = vadd.f32 %v1015, %v1037
  %v1054 = vadd.f32 %v1016, %v1038
  %v1055 = vadd.f32 %v1017, %v1039
  %v1056 = vadd.f32 %v1018, %v1040
  %v1057 = vadd.f32 %v1019, %v1041
  %v1059 = vlaneseq
  %v1060 = vshrl.u32 %v1059, 7
  %v1061 = vsub.s32 0, %v1060
  %v1062 = vrot.slane %v997, %v1061
  %v1064 = vmul.f32 %v1062, %v570
  %v1065 = vmul.f32 %v1062, %v572
  %v1066 = vmul.f32 %v1062, %v574
  %v1067 = vmul.f32 %v1062, %v576
  %v1068 = vmul.f32 %v1062, %v578
  %v1069 = vmul.f32 %v1062, %v580
  %v1070 = vmul.f32 %v1062, %v582
  %v1071 = vmul.f32 %v1062, %v584
  %v1072 = vmul.f32 %v1062, %v586
  %v1073 = vmul.f32 %v1062, %v588
  %v1074 = vmul.f32 %v1062, %v590
  %v1075 = vmul.f32 %v1062, %v592
  %v1076 = vmul.f32 %v1062, %v594
  %v1077 = vmul.f32 %v1062, %v596
  %v1078 = vmul.f32 %v1062, %v598
  %v1079 = vmul.f32 %v1062, %v600
  %v1080 = vadd.f32 %v1042, %v1064
  %v1081 = vadd.f32 %v1043, %v1065
  %v1082 = vadd.f32 %v1044, %v1066
  %v1083 = vadd.f32 %v1045, %v1067
  %v1084 = vadd.f32 %v1046, %v1068
  %v1085 = vadd.f32 %v1047, %v1069
  %v1086 = vadd.f32 %v1048, %v1070
  %v1087 = vadd.f32 %v1049, %v1071
  %v1088 = vadd.f32 %v1050, %v1072
  %v1089 = vadd.f32 %v1051, %v1073
  %v1090 = vadd.f32 %v1052, %v1074
  %v1091 = vadd.f32 %v1053, %v1075
  %v1092 = vadd.f32 %v1054, %v1076
  %v1093 = vadd.f32 %v1055, %v1077
  %v1094 = vadd.f32 %v1056, %v1078
  %v1095 = vadd.f32 %v1057, %v1079
  %vm1096 = vcmask 195584
  %1097 = vst.msk [vmem:[%s9] sm:$0xff] %vm1096, %v1080
  %1098 = vst.msk [vmem:[%s9 + $0x8] sm:$0xff] %vm1096, %v1081
  %1099 = vst.msk [vmem:[%s9 + $0x10] sm:$0xff] %vm1096, %v1082
  %1100 = vst.msk [vmem:[%s9 + $0x18] sm:$0xff] %vm1096, %v1083
  %1101 = vst.msk [vmem:[%s9 + $0x20] sm:$0xff] %vm1096, %v1084
  %1102 = vst.msk [vmem:[%s9 + $0x28] sm:$0xff] %vm1096, %v1085
  %1103 = vst.msk [vmem:[%s9 + $0x30] sm:$0xff] %vm1096, %v1086
  %1104 = vst.msk [vmem:[%s9 + $0x38] sm:$0xff] %vm1096, %v1087
  %1105 = vst.msk [vmem:[%s9 + $0x40] sm:$0xff] %vm1096, %v1088
  %1106 = vst.msk [vmem:[%s9 + $0x48] sm:$0xff] %vm1096, %v1089
  %1107 = vst.msk [vmem:[%s9 + $0x50] sm:$0xff] %vm1096, %v1090
  %1108 = vst.msk [vmem:[%s9 + $0x58] sm:$0xff] %vm1096, %v1091
  %1109 = vst.msk [vmem:[%s9 + $0x60] sm:$0xff] %vm1096, %v1092
  %1110 = vst.msk [vmem:[%s9 + $0x68] sm:$0xff] %vm1096, %v1093
  %1111 = vst.msk [vmem:[%s9 + $0x70] sm:$0xff] %vm1096, %v1094
  %1112 = vst.msk [vmem:[%s9 + $0x78] sm:$0xff] %vm1096, %v1095
  // Predicated region
  $region38: #{detect_multibackend_forward.1} parent=0 // pred_check
    _
  $region39: #{detect_multibackend_forward.1} parent=0 // pred_check_branch
    %1114 = sbr.rel (0) target = $region41
  $region40: #{detect_multibackend_forward.1} parent=0 // pred_region
    _
  $region41: #{detect_multibackend_forward.1} parent=0 // pred_fallthru
    _
  // Predicated region
  $region42: #{detect_multibackend_forward.1} parent=0 // pred_check
    _
  $region43: #{detect_multibackend_forward.1} parent=0 // pred_check_branch
    %1116 = sbr.rel (0) target = $region45
  $region44: #{detect_multibackend_forward.1} parent=0 // pred_region
    _
  $region45: #{detect_multibackend_forward.1} parent=0 // pred_fallthru
    _

</llo_original>
